<compile_context>
chip_gen: v6e
topology: v6e:2x2x1
jax: 0.10.0
libtpu: 0.0.40
codegen_flags: <defaults>
</compile_context>

<pallas_src>
import math

import jax
import jax.numpy as jnp
from jax.experimental import pallas as pl
from jax.experimental.pallas import tpu as pltpu


def gcn_kernel(x_ref, w_ref, a_ref, bias_ref, o_ref, support_ref):
    # x_ref:       (1, N, K)   one batch slice of X          (compute dtype)
    # w_ref:       (K, J)      weight                        (compute dtype)
    # a_ref:       (tm, N)     row tile of normalized A      (compute dtype)
    # bias_ref:    (1, J)      bias                          (float32)
    # o_ref:       (1, tm, J)  row tile of this batch slice's output
    # support_ref: (N, J)      VMEM scratch: X[b] @ W, reused across row tiles

    # Stage 1: support = X[b] @ W, computed once per batch slice (row tile 0).
    @pl.when(pl.program_id(1) == 0)
    def _():
        s = jnp.dot(x_ref[0], w_ref[...], preferred_element_type=jnp.float32)
        support_ref[...] = s.astype(support_ref.dtype)

    # Stage 2: out[rows] = norm_A[rows, :] @ support + bias   (one MXU matmul).
    out = jnp.dot(a_ref[...], support_ref[...],
                  preferred_element_type=jnp.float32)
    o_ref[0] = (out + bias_ref[...]).astype(o_ref.dtype)


def norm_adjacency(A):
    # Matches torch: D^{-1/2} A D^{-1/2} with d = A.sum(1).
    # NOTE: zero-degree nodes give inf/NaN exactly like the PyTorch reference.
    A = A.astype(jnp.float32)
    d_inv_sqrt = jnp.power(A.sum(axis=1), -0.5)
    return d_inv_sqrt[:, None] * A * d_inv_sqrt[None, :]


def precompute_gcn_params(A, W, bias=None, *, compute_dtype=jnp.bfloat16):
    """Per-(A, W) preprocessing. Hoist/call once when A and W are static."""
    J = W.shape[1]
    norm_A = norm_adjacency(A).astype(compute_dtype)        # (N, N)
    W_c = W.astype(compute_dtype)                            # (K, J)
    if bias is None:
        bias = jnp.zeros((J,), dtype=jnp.float32)
    bias_2d = bias.astype(jnp.float32).reshape(1, J)         # (1, J)
    return norm_A, W_c, bias_2d


def gcn_apply(X, norm_A, W_c, bias_2d, *, row_tile=None,
              compute_dtype=jnp.bfloat16):
    """X: (M, T, N, K) with precomputed norm_A/(K,J) weight -> (M, T, N, J)."""
    M, T, N, K = X.shape
    J = W_c.shape[1]
    B = M * T

    if row_tile is None:
        # Keep norm_A un-tiled for small graphs; row-tile once the resident
        # working set matters (especially v7x: 64 MiB VMEM).
        row_tile = N if N <= 1024 else 256
    tm = min(row_tile, N)
    assert tm == N or tm % 8 == 0, "row_tile must be a multiple of 8 (or == N)"
    R = pl.cdiv(N, tm)

    # Free reshape + dtype cast only -- no HBM transpose pass.
    x = X.reshape(B, N, K).astype(compute_dtype)

    # Size the scoped-VMEM limit from the actual (double-buffered) blocks.
    isz = jnp.dtype(compute_dtype).itemsize
    vmem_est = (2 * (N * K + K * J + tm * N) * isz     # x / W / A blocks
                + 2 * tm * J * X.dtype.itemsize        # output block
                + 2 * J * 4                            # bias block
                + N * J * isz)                         # support scratch
    vmem_limit = None
    if vmem_est > (32 << 20):
        # TODO(synk): on v7x (64 MiB physical VMEM) prefer shrinking row_tile
        # over raising the limit past ~56 MiB.
        vmem_limit = min(int(vmem_est * 1.25), 100 << 20)

    out = pl.pallas_call(
        gcn_kernel,
        out_shape=jax.ShapeDtypeStruct((B, N, J), X.dtype),
        grid_spec=pltpu.PrefetchScalarGridSpec(
            num_scalar_prefetch=0,
            grid=(B, R),
            in_specs=[
                # One batch slice; constant over the row-tile axis, so Pallas
                # does not re-DMA it between row tiles.
                pl.BlockSpec((1, N, K), lambda b, r: (b, 0, 0)),
                # Grid-invariant operands (constant index_map): Pallas skips
                # the re-DMA; single-buffering them (pl.Buffered(1)) is the
                # follow-up lever when VMEM residency gets tight.
                pl.BlockSpec((K, J), lambda b, r: (0, 0)),
                # Row tile of norm_A; contraction dim (N) stays un-tiled.
                pl.BlockSpec((tm, N), lambda b, r: (r, 0)),
                pl.BlockSpec((1, J), lambda b, r: (0, 0)),
            ],
            out_specs=pl.BlockSpec((1, tm, J), lambda b, r: (b, r, 0)),
            scratch_shapes=[pltpu.VMEM((N, J), compute_dtype)],
        ),
        compiler_params=pltpu.CompilerParams(
            dimension_semantics=("parallel", "arbitrary"),
            vmem_limit_bytes=vmem_limit),
    )(x, W_c, norm_A, bias_2d)

    # Free reshape only -- no HBM transpose pass.
    return out.reshape(M, T, N, J)


def gcn_forward(X, A, W, bias=None, *, row_tile=None,
                compute_dtype=jnp.bfloat16):
    """Convenience wrapper: normalization + cast + kernel in one call."""
    norm_A, W_c, bias_2d = precompute_gcn_params(
        A, W, bias, compute_dtype=compute_dtype)
    return gcn_apply(X, norm_A, W_c, bias_2d, row_tile=row_tile,
                     compute_dtype=compute_dtype)


def gcn_reference(X, A, W, bias):
    support = jnp.einsum('mtik,kj->mtij', X, W)
    d = A.sum(1)
    d_inv_sqrt = jnp.power(d, -0.5)
    norm_A = d_inv_sqrt[:, None] * A * d_inv_sqrt[None, :]
    out = jnp.einsum('ki,mtij->mtkj', norm_A, support)
    return out + bias


if __name__ == "__main__":
    # Small shapes consistent with the module.
    M, T, N = 2, 3, 8          # batch, time, num graph nodes
    input_dim, output_dim = 16, 32

    key = jax.random.PRNGKey(0)
    kx, ka, kw = jax.random.split(key, 3)

    X = jax.random.normal(kx, (M, T, N, input_dim), dtype=jnp.float32)
    # Positive adjacency so row sums are > 0 (pow(d, -0.5) stays finite).
    A = jax.random.uniform(ka, (N, N), dtype=jnp.float32, minval=0.1, maxval=1.0)

    # Deterministic kaiming-uniform-style init for weight, zeros for bias.
    fan_in = output_dim  # torch kaiming_uniform_ uses tensor.size(1) as fan_in
    bound = math.sqrt(6.0 / fan_in)
    W = jax.random.uniform(kw, (input_dim, output_dim), dtype=jnp.float32,
                           minval=-bound, maxval=bound)
    bias = jnp.zeros((output_dim,), dtype=jnp.float32)

    out = jax.jit(gcn_forward)(X, A, W, bias)
    out = jax.block_until_ready(out)

    ref = gcn_reference(X, A, W, bias)
    assert out.shape == (M, T, N, output_dim)
    # bf16 MXU operands with f32 accumulation -> loosened tolerance vs f32 ref.
    assert jnp.allclose(out, ref, atol=5e-2, rtol=5e-2), "mismatch vs reference"

    print("KERNEL_OK")
</pallas_src>

<mosaic_0001>
module attributes {stable_mosaic.version = 11 : i64} {
  func.func @gcn_kernel(%arg0: i32, %arg1: i32, %arg2: memref<1x8x16xbf16, #tpu.memory_space<vmem>>, %arg3: memref<16x32xbf16, #tpu.memory_space<vmem>>, %arg4: memref<8x8xbf16, #tpu.memory_space<vmem>>, %arg5: memref<1x32xf32, #tpu.memory_space<vmem>>, %arg6: memref<1x8x32xf32, #tpu.memory_space<vmem>>, %arg7: memref<8x32xbf16, #tpu.memory_space<vmem>>) attributes {dimension_semantics = [#tpu.dimension_semantics<parallel>, #tpu.dimension_semantics<arbitrary>], iteration_bounds = array<i64: 6, 1>, scalar_prefetch = 0 : i64, scratch_operands = 1 : i64, tpu.core_type = #tpu.core_type<tc>, window_params = [{transform_indices = @transform_0, window_bounds = array<i64: 1, 8, 16>}, {pipeline_mode = #tpu.pipeline_mode<synchronous>, transform_indices = @transform_1, window_bounds = array<i64: 16, 32>}, {transform_indices = @transform_2, window_bounds = array<i64: 8, 8>}, {pipeline_mode = #tpu.pipeline_mode<synchronous>, transform_indices = @transform_3, window_bounds = array<i64: 1, 32>}, {transform_indices = @transform_4, window_bounds = array<i64: 1, 8, 32>}]} {
    %c0_i32 = arith.constant 0 : i32
    %0 = arith.cmpi eq, %arg1, %c0_i32 : i32
    %1 = arith.extui %0 : i1 to i32
    %c0_i32_0 = arith.constant 0 : i32
    %2 = arith.cmpi ne, %1, %c0_i32_0 : i32
    scf.if %2 {
      %c0_9 = arith.constant 0 : index
      %c0_10 = arith.constant 0 : index
      %c0_11 = arith.constant 0 : index
      %12 = vector.load %arg2[%c0_9, %c0_10, %c0_11] : memref<1x8x16xbf16, #tpu.memory_space<vmem>>, vector<1x8x16xbf16>
      %13 = vector.shape_cast %12 : vector<1x8x16xbf16> to vector<8x16xbf16>
      %c0_12 = arith.constant 0 : index
      %c0_13 = arith.constant 0 : index
      %14 = vector.load %arg3[%c0_12, %c0_13] : memref<16x32xbf16, #tpu.memory_space<vmem>>, vector<16x32xbf16>
      %cst_14 = arith.constant dense<0.000000e+00> : vector<8x32xf32>
      %15 = tpu.matmul %13, %14, %cst_14 {dimension_numbers = #tpu.dot_dimension_numbers<[1], [0], [0], [1], [0, 0, 1, 1], [], []>} : vector<8x16xbf16>, vector<16x32xbf16>, vector<8x32xf32> -> vector<8x32xf32>
      %16 = arith.truncf %15 : vector<8x32xf32> to vector<8x32xbf16>
      %c0_15 = arith.constant 0 : index
      %c0_16 = arith.constant 0 : index
      %17 = vector.load %arg7[%c0_15, %c0_16] : memref<8x32xbf16, #tpu.memory_space<vmem>>, vector<8x32xbf16>
      tpu.vector_store %arg7[%c0_15, %c0_16], %16 {strides = array<i32>} : memref<8x32xbf16, #tpu.memory_space<vmem>>, vector<8x32xbf16>,
    } else {
    }
    %c0 = arith.constant 0 : index
    %c0_1 = arith.constant 0 : index
    %3 = vector.load %arg4[%c0, %c0_1] : memref<8x8xbf16, #tpu.memory_space<vmem>>, vector<8x8xbf16>
    %c0_2 = arith.constant 0 : index
    %c0_3 = arith.constant 0 : index
    %4 = vector.load %arg7[%c0_2, %c0_3] : memref<8x32xbf16, #tpu.memory_space<vmem>>, vector<8x32xbf16>
    %cst = arith.constant dense<0.000000e+00> : vector<8x32xf32>
    %5 = tpu.matmul %3, %4, %cst {dimension_numbers = #tpu.dot_dimension_numbers<[1], [0], [0], [1], [0, 0, 1, 1], [], []>} : vector<8x8xbf16>, vector<8x32xbf16>, vector<8x32xf32> -> vector<8x32xf32>
    %c0_4 = arith.constant 0 : index
    %c0_5 = arith.constant 0 : index
    %6 = vector.load %arg5[%c0_4, %c0_5] : memref<1x32xf32, #tpu.memory_space<vmem>>, vector<1x32xf32>
    %7 = vector.broadcast %6 : vector<1x32xf32> to vector<8x32xf32>
    %8 = arith.addf %5, %7 : vector<8x32xf32>
    %c0_6 = arith.constant 0 : index
    %c0_7 = arith.constant 0 : index
    %c0_8 = arith.constant 0 : index
    %9 = vector.load %arg6[%c0_6, %c0_7, %c0_8] : memref<1x8x32xf32, #tpu.memory_space<vmem>>, vector<1x8x32xf32>
    %10 = vector.shape_cast %9 : vector<1x8x32xf32> to vector<8x32xf32>
    %11 = vector.shape_cast %8 : vector<8x32xf32> to vector<1x8x32xf32>
    tpu.vector_store %arg6[%c0_6, %c0_7, %c0_8], %11 {strides = array<i32>} : memref<1x8x32xf32, #tpu.memory_space<vmem>>, vector<1x8x32xf32>,
    return
  }
  func.func @transform_0(%arg0: i32, %arg1: i32) -> (i32, i32, i32) {
    %c0_i32 = arith.constant 0 : i32
    %c0_i32_0 = arith.constant 0 : i32
    %c0_i32_1 = arith.constant 0 : i32
    return %arg0, %c0_i32, %c0_i32_0 : i32, i32, i32
  }
  func.func @transform_1(%arg0: i32, %arg1: i32) -> (i32, i32) {
    %c0_i32 = arith.constant 0 : i32
    %c0_i32_0 = arith.constant 0 : i32
    %c0_i32_1 = arith.constant 0 : i32
    return %c0_i32, %c0_i32_0 : i32, i32
  }
  func.func @transform_2(%arg0: i32, %arg1: i32) -> (i32, i32) {
    %c0_i32 = arith.constant 0 : i32
    %c0_i32_0 = arith.constant 0 : i32
    return %arg1, %c0_i32 : i32, i32
  }
  func.func @transform_3(%arg0: i32, %arg1: i32) -> (i32, i32) {
    %c0_i32 = arith.constant 0 : i32
    %c0_i32_0 = arith.constant 0 : i32
    %c0_i32_1 = arith.constant 0 : i32
    return %c0_i32, %c0_i32_0 : i32, i32
  }
  func.func @transform_4(%arg0: i32, %arg1: i32) -> (i32, i32, i32) {
    %c0_i32 = arith.constant 0 : i32
    %c0_i32_0 = arith.constant 0 : i32
    return %arg0, %arg1, %c0_i32 : i32, i32, i32
  }
}

</mosaic_0001>

<llo_original>
// kernel: gcn_forward.1
$region0: #{gcn_forward.1}
  #allocation0 [shape = 'u32[]', space=smem, size = 0x4, offset = 0x4, fixed_abs, tag = 'smem constant byte address 0x4 - core index']
  #allocation1 [shape = 'u32[144,128]{1,0:T(1,128)}', space=vmem, size = 0x12000, scoped, tag = 'internal scratch']
  #allocation2 [shape = 'bf16[8,32]{1,0:T(8,128)(2,1)}', space=vmem, size = 0x800, scoped, tag = 'scratch operand']
  %s0 = inlined_call_operand.vmem [shape: bf16[6,8,16], index: 0, kind: input, shape index: {}]
  %s1 = inlined_call_operand.vmem [shape: bf16[16,32], index: 1, kind: input, shape index: {}]
  %s2 = inlined_call_operand.vmem [shape: bf16[8,8], index: 2, kind: input, shape index: {}]
  %s3 = inlined_call_operand.vmem [shape: f32[1,32], index: 3, kind: input, shape index: {}]
  %s4 = inlined_call_operand.hbm [shape: f32[6,8,32], index: 4, kind: output, shape index: {}]
  %s5 = sld [smem:[#allocation0]]
  $region53: #{gcn_forward.1} parent=0
    _
  %s7 = ssub.s32 1, %s5
  %s8 = scalar_select 0, %s7, %s5
  $region1: #{gcn_forward.1} parent=0
    #allocation3 [shape = 'u8[8192]{0}', space=vmem, size = 0x2000, scoped, tag = 'output window, operand 0']
    #allocation4 [shape = 's32[2]{0}', space=sflag, size = 0x8, scoped, tag = 'scoped memory for gcn_forward.1']
    %9 = vsyncpa [#allocation4], 0
    %s10 = scalar_lea.sflag [#allocation4], 1
    %11 = vsyncpa %s10, 0
    loop: start=0, step=1, limit=8
    $region2: #{gcn_forward.1} parent=1 // loop_pre_header
      _
    $region3: #{gcn_forward.1} parent=1 // loop_header
      %s13 = sphi 0, %s17
      %p14 = scmp.ge.s32.totalorder %s13, 8
      %s20 = sphi 0, %s32
      %s21 = sphi 0, %s28
      %s22 = sphi 0, %s20
      %s23 = sphi 0, %s21
      %s24 = sphi 0, %s22
      %s25 = sphi 0, %s23
      %s35 = sphi 0, %s37
      %s38 = sphi 0, %s35
      %s39 = sphi 0, %s38
      %s55 = sphi 0, %s39
      %s59 = sphi 0, %s59
      %s61 = sphi 0, %s59
      %s62 = sphi 0, %s61
      %s76 = sphi 0, %s62
      %s82 = sphi 0, %s84
      %s85 = sphi 0, %s82
      %s86 = sphi 0, %s85
      %s102 = sphi 0, %s86
      %s106 = sphi 0, %s106
      %s108 = sphi 0, %s106
      %s109 = sphi 0, %s108
      %s123 = sphi 0, %s109
      %s131 = sphi 0, %s133
      %s134 = sphi 0, %s131
      %s135 = sphi 0, %s134
      %s151 = sphi 0, %s135
    $region4: #{gcn_forward.1} parent=1 // loop_header_branch
      %16 = sbr.rel (%p14) target = $region8
    $region5: #{gcn_forward.1} parent=1 // loop_body
      %s18 = ssub.s32 %s13, 1
      %s19 = ssub.s32 %s13, 2
      %s26 = sadd.s32 1, %s21
      %p27 = scmp.ge.s32.totalorder %s26, 1
      %s28 = scalar_select %p27, 0, %s26
      %s29 = sadd.s32 1, %s20
      %s30 = scalar_select %p27, %s29, %s20
      %p31 = scmp.ge.s32.totalorder %s30, 6
      %s32 = scalar_select %p31, 0, %s30
      %s33 = ssub.s32 %s20, %s32
      %p34 = scmp.eq.s32.totalorder %s33, 0
      %s36 = sadd.s32 %s35, 1
      %s37 = scalar_select %p34, %s35, %s36
      %p40 = pneg %p34
      %p41 = scmp.eq.s32.totalorder %s13, 5
      %p42 = por %p40, %p41
      %p43 = scmp.ne.s32.totalorder %s35, %s38
      %p44 = scmp.eq.s32.totalorder %s13, 0
      %p45 = por %p43, %p44
      %p46 = scmp.ne.s32.totalorder %s35, %s38
      %p47 = scmp.eq.s32.totalorder %s18, 5
      %p48 = por %p46, %p47
      %p49 = scmp.ne.s32.totalorder %s38, %s39
      %p50 = scmp.eq.s32.totalorder %s18, 0
      %p51 = por %p49, %p50
      %p52 = scmp.ne.s32.totalorder %s38, %s39
      %p53 = scmp.eq.s32.totalorder %s19, 5
      %p54 = por %p52, %p53
      %p56 = scmp.ne.s32.totalorder %s39, %s55
      %p57 = scmp.eq.s32.totalorder %s19, 0
      %p58 = por %p56, %p57
      %s60 = sadd.s32 %s59, 1
      %p63 = scmp.eq.s32.totalorder %s13, 5
      %p64 = scmp.ne.s32.totalorder %s59, %s61
      %p65 = scmp.eq.s32.totalorder %s13, 0
      %p66 = por %p64, %p65
      %p67 = scmp.ne.s32.totalorder %s59, %s61
      %p68 = scmp.eq.s32.totalorder %s18, 5
      %p69 = por %p67, %p68
      %p70 = scmp.ne.s32.totalorder %s61, %s62
      %p71 = scmp.eq.s32.totalorder %s18, 0
      %p72 = por %p70, %p71
      %p73 = scmp.ne.s32.totalorder %s61, %s62
      %p74 = scmp.eq.s32.totalorder %s19, 5
      %p75 = por %p73, %p74
      %p77 = scmp.ne.s32.totalorder %s62, %s76
      %p78 = scmp.eq.s32.totalorder %s19, 0
      %p79 = por %p77, %p78
      %s80 = ssub.s32 %s21, %s28
      %p81 = scmp.eq.s32.totalorder %s80, 0
      %s83 = sadd.s32 %s82, 1
      %s84 = scalar_select %p81, %s82, %s83
      %p87 = pneg %p81
      %p88 = scmp.eq.s32.totalorder %s13, 5
      %p89 = por %p87, %p88
      %p90 = scmp.ne.s32.totalorder %s82, %s85
      %p91 = scmp.eq.s32.totalorder %s13, 0
      %p92 = por %p90, %p91
      %p93 = scmp.ne.s32.totalorder %s82, %s85
      %p94 = scmp.eq.s32.totalorder %s18, 5
      %p95 = por %p93, %p94
      %p96 = scmp.ne.s32.totalorder %s85, %s86
      %p97 = scmp.eq.s32.totalorder %s18, 0
      %p98 = por %p96, %p97
      %p99 = scmp.ne.s32.totalorder %s85, %s86
      %p100 = scmp.eq.s32.totalorder %s19, 5
      %p101 = por %p99, %p100
      %p103 = scmp.ne.s32.totalorder %s86, %s102
      %p104 = scmp.eq.s32.totalorder %s19, 0
      %p105 = por %p103, %p104
      %s107 = sadd.s32 %s106, 1
      %p110 = scmp.eq.s32.totalorder %s13, 5
      %p111 = scmp.ne.s32.totalorder %s106, %s108
      %p112 = scmp.eq.s32.totalorder %s13, 0
      %p113 = por %p111, %p112
      %p114 = scmp.ne.s32.totalorder %s106, %s108
      %p115 = scmp.eq.s32.totalorder %s18, 5
      %p116 = por %p114, %p115
      %p117 = scmp.ne.s32.totalorder %s108, %s109
      %p118 = scmp.eq.s32.totalorder %s18, 0
      %p119 = por %p117, %p118
      %p120 = scmp.ne.s32.totalorder %s108, %s109
      %p121 = scmp.eq.s32.totalorder %s19, 5
      %p122 = por %p120, %p121
      %p124 = scmp.ne.s32.totalorder %s109, %s123
      %p125 = scmp.eq.s32.totalorder %s19, 0
      %p126 = por %p124, %p125
      %s127 = ssub.s32 %s20, %s32
      %s128 = ssub.s32 %s21, %s28
      %s129 = sor.u32 %s127, %s128
      %p130 = scmp.eq.s32.totalorder %s129, 0
      %s132 = sadd.s32 %s131, 1
      %s133 = scalar_select %p130, %s131, %s132
      %p136 = pneg %p130
      %p137 = scmp.eq.s32.totalorder %s13, 5
      %p138 = por %p136, %p137
      %p139 = scmp.ne.s32.totalorder %s131, %s134
      %p140 = scmp.eq.s32.totalorder %s13, 0
      %p141 = por %p139, %p140
      %p142 = scmp.ne.s32.totalorder %s131, %s134
      %p143 = scmp.eq.s32.totalorder %s18, 5
      %p144 = por %p142, %p143
      %p145 = scmp.ne.s32.totalorder %s134, %s135
      %p146 = scmp.eq.s32.totalorder %s18, 0
      %p147 = por %p145, %p146
      %p148 = scmp.ne.s32.totalorder %s134, %s135
      %p149 = scmp.eq.s32.totalorder %s19, 5
      %p150 = por %p148, %p149
      %p152 = scmp.ne.s32.totalorder %s135, %s151
      %p153 = scmp.eq.s32.totalorder %s19, 0
      %p154 = por %p152, %p153
      %p155 = scmp.le.s32.totalorder 1, %s13
      %p156 = scmp.lt.s32.totalorder %s13, 7
      %p157 = pnand %p155, %p156
      %p158 = pneg %p157
      // Predicated region
      $region9: #{gcn_forward.1} parent=5 // pred_check
        _
      $region10: #{gcn_forward.1} parent=5 // pred_check_branch
        %160 = sbr.rel (%p157) target = $region12
      $region11: #{gcn_forward.1} parent=5 // pred_region
        %s161 = ssub.s32 %s13, 1
        // Predicated region
        $region13: #{gcn_forward.1} parent=11 // pred_check
          %p162 = pneg %p72
        $region14: #{gcn_forward.1} parent=11 // pred_check_branch
          %164 = sbr.rel (%p162) target = $region16
        $region15: #{gcn_forward.1} parent=11 // pred_region
          _
        $region16: #{gcn_forward.1} parent=11 // pred_fallthru
          _
        // Predicated region
        $region17: #{gcn_forward.1} parent=11 // pred_check
          %p165 = pneg %p98
        $region18: #{gcn_forward.1} parent=11 // pred_check_branch
          %167 = sbr.rel (%p165) target = $region20
        $region19: #{gcn_forward.1} parent=11 // pred_region
          %p168 = scmp.lt.s32.totalorder %s23, 0
          %s169 = scalar_select %p168, %s23, 0
          %s170 = smul.addr %s169, 4
          %s171 = scalar_lea.vmem %s2, %s170
        $region20: #{gcn_forward.1} parent=11 // pred_fallthru
          _
        // Predicated region
        $region21: #{gcn_forward.1} parent=11 // pred_check
          %p172 = pneg %p119
        $region22: #{gcn_forward.1} parent=11 // pred_check_branch
          %174 = sbr.rel (%p172) target = $region24
        $region23: #{gcn_forward.1} parent=11 // pred_region
          _
        $region24: #{gcn_forward.1} parent=11 // pred_fallthru
          _
      $region12: #{gcn_forward.1} parent=5 // pred_fallthru
        _
      %p175 = scmp.lt.s32.totalorder %s13, 6
      // Predicated region
      $region25: #{gcn_forward.1} parent=5 // pred_check
        %p176 = pneg %p175
      $region26: #{gcn_forward.1} parent=5 // pred_check_branch
        %178 = sbr.rel (%p176) target = $region28
      $region27: #{gcn_forward.1} parent=5 // pred_region
        // Predicated region
        $region29: #{gcn_forward.1} parent=27 // pred_check
          %p179 = pneg %p45
        $region30: #{gcn_forward.1} parent=27 // pred_check_branch
          %181 = sbr.rel (%p179) target = $region32
        $region31: #{gcn_forward.1} parent=27 // pred_region
          %p182 = scmp.lt.s32.totalorder %s20, 5
          %s183 = scalar_select %p182, %s20, 5
          %s184 = smul.addr %s183, 4
          %s185 = scalar_lea.vmem %s0, %s184
        $region32: #{gcn_forward.1} parent=27 // pred_fallthru
          _
      $region28: #{gcn_forward.1} parent=5 // pred_fallthru
        _
      %p186 = scmp.le.s32.totalorder 1, %s13
      %p187 = scmp.lt.s32.totalorder %s13, 7
      %p188 = pnand %p186, %p187
      %p189 = pneg %p188
      // Predicated region
      $region33: #{gcn_forward.1} parent=5 // pred_check
        _
      $region34: #{gcn_forward.1} parent=5 // pred_check_branch
        %191 = sbr.rel (%p188) target = $region36
      $region35: #{gcn_forward.1} parent=5 // pred_region
        %s192 = ssub.s32 %s13, 1
        %p193 = scmp.lt.s32.totalorder %s22, 5
        %s194 = scalar_select %p193, %s22, 5
        %s195 = smul.addr %s194, 4
        %s196 = scalar_lea.vmem %s0, %s195
        %p197 = pneg %p51
        %p198 = pneg %p48
        %p199 = pneg %p72
        %p200 = pneg %p69
        %p201 = scmp.lt.s32.totalorder %s23, 0
        %s202 = scalar_select %p201, %s23, 0
        %s203 = smul.addr %s202, 4
        %s204 = scalar_lea.vmem %s2, %s203
        %p205 = pneg %p98
        %p206 = pneg %p95
        %p207 = pneg %p119
        %p208 = pneg %p116
        %p209 = pneg %p147
        %p210 = pneg %p144
        %s211 = sand.u32 %s134, 1
        %s212 = scalar_lea.sflag [#allocation4], %s211
        %s213 = sand.u32 %s134, 1
        %s214 = smul.addr %s213, 8
        %s215 = scalar_lea.vmem [#allocation3], %s214
        %p216 = scmp.lt.s32.totalorder %s22, 5
        %s217 = scalar_select %p216, %s22, 5
        %s218 = smul.addr %s217, 4
        %s219 = scalar_lea.vmem %s0, %s218
        %p220 = scmp.lt.s32.totalorder %s23, 0
        %s221 = scalar_select %p220, %s23, 0
        %s222 = smul.addr %s221, 4
        %s223 = scalar_lea.vmem %s2, %s222
        %p225 = scmp.eq.s32.totalorder %s23, 0
        // Predicated region
        $region37: #{gcn_forward.1} parent=35 // pred_check
          %p226 = pneg %p225
        $region38: #{gcn_forward.1} parent=35 // pred_check_branch
          %228 = sbr.rel (%p226) target = $region40
        $region39: #{gcn_forward.1} parent=35 // pred_region
          %v229 = vld [vmem:[%s219] sm:$0xf]
          %v230 = vld [vmem:[%s1] sm:$0xf]
          %v231 = vld [vmem:[%s1 + $0x4] sm:$0xf]
          %v234 = vunpack.c.l.b16 %v230
          %v235 = vunpack.c.l.b16 %v231
          %v236 = vpack.c.b16 %v235, %v234
          %vm238 = vcmask 130048
          %v240 = vsel %vm238, %v229, 0
          %242 = vmatprep.subr.bf16.mxu0 0
          %243 = vmatpush1.bf16.msra.mxu0 0
          %244 = vmatprep.subr.bf16.mxu0 0
          %245 = vmatpush1.bf16.msra.mxu0 0
          %246 = vmatprep.subr.bf16.mxu0 0
          %247 = vmatpush1.bf16.msra.mxu0 0
          %248 = vmatprep.subr.bf16.mxu0 0
          %249 = vmatpush1.bf16.msra.mxu0 0
          %250 = vmatprep.subr.bf16.mxu0 0
          %251 = vmatpush1.bf16.msra.mxu0 0
          %252 = vmatprep.subr.bf16.mxu0 0
          %253 = vmatpush1.bf16.msra.mxu0 0
          %254 = vmatprep.subr.bf16.mxu0 0
          %255 = vmatpush1.bf16.msra.mxu0 0
          %256 = vmatprep.subr.bf16.mxu0 0
          %257 = vmatpush1.bf16.msra.mxu0 %v236
          %258 = vmatprep.subr.bf16.mxu0 0
          %259 = vmatpush2.bf16.msra.mxu0 0
          %260 = vmatprep.subr.bf16.mxu0 0
          %261 = vmatpush2.bf16.msra.mxu0 0
          %262 = vmatprep.subr.bf16.mxu0 0
          %263 = vmatpush2.bf16.msra.mxu0 0
          %264 = vmatprep.subr.bf16.mxu0 0
          %265 = vmatpush2.bf16.msra.mxu0 0
          %266 = vmatprep.subr.bf16.mxu0 0
          %267 = vmatpush2.bf16.msra.mxu0 0
          %268 = vmatprep.subr.bf16.mxu0 0
          %269 = vmatpush2.bf16.msra.mxu0 0
          %270 = vmatprep.subr.bf16.mxu0 0
          %271 = vmatpush2.bf16.msra.mxu0 0
          %272 = vmatprep.subr.bf16.mxu0 0
          %273 = vmatpush2.bf16.msra.mxu0 0
          %274 = vmatprep.mubr.bf16.mxu0 0
          %275 = vmatmul.mubr.bf16.gmra.mxu0 %v240
          %v276 = vpop.f32.mrf.mxu0
          %v277 = vadd.f32 0.0, %v276
          %v278 = vpop.f32.mrf.mxu0
          %v279 = vpop.f32.mrf.mxu0
          %v280 = vpop.f32.mrf.mxu0
          %281 = vdwg.mxu0
          %v282 = vpack.c.bf16 %v277, %v277
          %vm283 = vcmask 257024
          %284 = vst.msk [vmem:[#allocation2] sm:$0xf] %vm283, %v282
        $region40: #{gcn_forward.1} parent=35 // pred_fallthru
          _
        %v285 = vld [vmem:[%s223] sm:$0xf]
        %v286 = vld [vmem:[#allocation2] sm:$0xf]
        %v287 = vld [vmem:[%s3] sm:$0x1]
        %v289 = vlaneseq
        %v290 = vshrl.u32 %v289, 7
        %v291 = vsub.s32 0, %v290
        %v292 = vrot.slane %v287, %v291
        %vm294 = vcmask 64512
        %v296 = vsel %vm294, %v285, 0
        %vm298 = vcmask 1043456
        %v300 = vsel %vm298, %v286, 0
        %302 = vmatprep.subr.bf16.mxu0 0
        %303 = vmatpush1.bf16.msra.mxu0 0
        %304 = vmatprep.subr.bf16.mxu0 0
        %305 = vmatpush1.bf16.msra.mxu0 0
        %306 = vmatprep.subr.bf16.mxu0 0
        %307 = vmatpush1.bf16.msra.mxu0 0
        %308 = vmatprep.subr.bf16.mxu0 0
        %309 = vmatpush1.bf16.msra.mxu0 0
        %310 = vmatprep.subr.bf16.mxu0 0
        %311 = vmatpush1.bf16.msra.mxu0 0
        %312 = vmatprep.subr.bf16.mxu0 0
        %313 = vmatpush1.bf16.msra.mxu0 0
        %314 = vmatprep.subr.bf16.mxu0 0
        %315 = vmatpush1.bf16.msra.mxu0 0
        %316 = vmatprep.subr.bf16.mxu0 0
        %317 = vmatpush1.bf16.msra.mxu0 %v300
        %318 = vmatprep.subr.bf16.mxu0 0
        %319 = vmatpush2.bf16.msra.mxu0 0
        %320 = vmatprep.subr.bf16.mxu0 0
        %321 = vmatpush2.bf16.msra.mxu0 0
        %322 = vmatprep.subr.bf16.mxu0 0
        %323 = vmatpush2.bf16.msra.mxu0 0
        %324 = vmatprep.subr.bf16.mxu0 0
        %325 = vmatpush2.bf16.msra.mxu0 0
        %326 = vmatprep.subr.bf16.mxu0 0
        %327 = vmatpush2.bf16.msra.mxu0 0
        %328 = vmatprep.subr.bf16.mxu0 0
        %329 = vmatpush2.bf16.msra.mxu0 0
        %330 = vmatprep.subr.bf16.mxu0 0
        %331 = vmatpush2.bf16.msra.mxu0 0
        %332 = vmatprep.subr.bf16.mxu0 0
        %333 = vmatpush2.bf16.msra.mxu0 0
        %334 = vmatprep.mubr.bf16.mxu0 0
        %335 = vmatmul.mubr.bf16.gmra.mxu0 %v296
        %v336 = vpop.f32.mrf.mxu0
        %v337 = vadd.f32 %v292, %v336
        %v338 = vpop.f32.mrf.mxu0
        %v339 = vpop.f32.mrf.mxu0
        %v340 = vpop.f32.mrf.mxu0
        %341 = vdwg.mxu0
        %vm342 = vcmask 261120
        %343 = vst.msk [vmem:[%s215] sm:$0xff] %vm342, %v337
        %s344 = sand.u32 %s134, 1
        %s345 = scalar_lea.sflag [#allocation4], %s344
        %s346 = sand.u32 %s134, 1
        %s347 = smul.addr %s346, 8
        %s348 = scalar_lea.vmem [#allocation3], %s347
        // Predicated region
        $region41: #{gcn_forward.1} parent=35 // pred_check
          %p349 = pneg %p144
        $region42: #{gcn_forward.1} parent=35 // pred_check_branch
          %351 = sbr.rel (%p349) target = $region44
        $region43: #{gcn_forward.1} parent=35 // pred_region
          %s353 = ssub.s32 128, 128
          %354 = vsyncadd %s345, %s353
          %s355 = sadd.s32 %s23, %s22
          %s356 = smul.addr %s355, 128
          %s357 = scalar_lea.hbm %s4, %s356
          %s359 = sshll.u32 %s348, 4
          %s360 = int_to_ptr.vmem [resolvable:$true] %s359
          %362 = dma.vmem_to_hbm [thread:$0]  %s360, 128, %s357, %s345
        $region44: #{gcn_forward.1} parent=35 // pred_fallthru
          _
      $region36: #{gcn_forward.1} parent=5 // pred_fallthru
        _
      %p363 = scmp.le.s32.totalorder 2, %s13
      // Predicated region
      $region45: #{gcn_forward.1} parent=5 // pred_check
        %p364 = pneg %p363
      $region46: #{gcn_forward.1} parent=5 // pred_check_branch
        %366 = sbr.rel (%p364) target = $region48
      $region47: #{gcn_forward.1} parent=5 // pred_region
        %s367 = ssub.s32 %s13, 2
        // Predicated region
        $region49: #{gcn_forward.1} parent=47 // pred_check
          %p368 = pneg %p150
        $region50: #{gcn_forward.1} parent=47 // pred_check_branch
          %370 = sbr.rel (%p368) target = $region52
        $region51: #{gcn_forward.1} parent=47 // pred_region
          %s371 = sand.u32 %s135, 1
          %s372 = scalar_lea.sflag [#allocation4], %s371
          %s373 = sand.u32 %s135, 1
          %s374 = smul.addr %s373, 8
          %s375 = scalar_lea.vmem [#allocation3], %s374
          %376 = dma.done %s372, 128
        $region52: #{gcn_forward.1} parent=47 // pred_fallthru
          _
      $region48: #{gcn_forward.1} parent=5 // pred_fallthru
        _
    $region6: #{gcn_forward.1} parent=1 // loop_footer
      %s17 = sadd.s32 1, %s13
    $region7: #{gcn_forward.1} parent=1 // loop_footer_branch
      %12 = sbr.rel target = $region3
    $region8: #{gcn_forward.1} parent=1 // loop_exit
      _
    %377 = vsyncpa [#allocation4], 1
    %s378 = scalar_lea.sflag [#allocation4], 1
    %379 = vsyncpa %s378, 1

</llo_original>
